<compile_context>
chip_gen: v7x
topology: tpu7x:2x2x1
jax: 0.10.0
libtpu: 0.0.40
codegen_flags: <defaults>
</compile_context>

<pallas_src>
import functools

import jax
import jax.numpy as jnp
from jax.experimental import pallas as pl
from jax.experimental.pallas import tpu as pltpu

# ----------------------------- model config ---------------------------------
IN_FEATURES = 32
HIDDEN = 64            # fixed by the module (nn.Linear(in_channels, 64))
NUM_CLASSES = 10
NUM_LAYERS = 3
BATCH = 16

LANE = 128             # TPU lane width: pad feature dims to this
SUBLANE = 8            # pad batch rows to a multiple of this


def _round_up(n, m):
    return (n + m - 1) // m * m


def _pad_last2(a, rows, cols):
    """Zero-pad the last two dims of `a` up to (rows, cols)."""
    pad = [(0, 0)] * (a.ndim - 2) + [(0, rows - a.shape[-2]),
                                     (0, cols - a.shape[-1])]
    return jnp.pad(a, pad)


# ------------------------------ Pallas kernel --------------------------------
def resnet_kernel(x_ref, w_in_ref, b_in_ref,
                  w1_ref, b1_ref, w2_ref, b2_ref,
                  w_out_ref, b_out_ref, o_ref, *, num_layers):
    # x_ref:     (Bp, 128) f32          (Bp = batch padded to multiple of 8)
    # w_in_ref:  (128, 128) bf16        b_in_ref:  (1, 128) f32
    # w1/w2_ref: (L, 128, 128) bf16     b1/b2_ref: (L, 1, 128) f32
    # w_out_ref: (128, 128) bf16        b_out_ref: (1, 128) f32
    # o_ref:     (Bp, 128) f32
    x = x_ref[...]

    # h = relu(fc1(x))   -- bf16 MXU operands, f32 accumulation
    h = jnp.dot(x.astype(jnp.bfloat16), w_in_ref[...],
                preferred_element_type=jnp.float32) + b_in_ref[...]
    h = jnp.maximum(h, 0.0)

    # residual blocks (num_layers is small and static -> unrolled python loop)
    for l in range(num_layers):
        residual = h
        t = jnp.dot(h.astype(jnp.bfloat16), w1_ref[l],
                    preferred_element_type=jnp.float32) + b1_ref[l]
        t = jnp.maximum(t, 0.0)                       # relu(fc1(x))
        t = jnp.dot(t.astype(jnp.bfloat16), w2_ref[l],
                    preferred_element_type=jnp.float32) + b2_ref[l]
        h = jnp.maximum(t + residual, 0.0)            # relu(out + residual)

    # logits = fc2(h)  (no activation); padded class lanes stay exactly 0
    out = jnp.dot(h.astype(jnp.bfloat16), w_out_ref[...],
                  preferred_element_type=jnp.float32) + b_out_ref[...]
    o_ref[...] = out.astype(o_ref.dtype)


# ------------------------------ wrapper ---------------------------------------
@functools.partial(jax.jit, static_argnames=("num_layers",))
def resnet_forward(x, params, *, num_layers=NUM_LAYERS):
    """x: (batch, in_features) f32; params: unpadded f32 (in, out) weights."""
    (w_in, b_in, w1, b1, w2, b2, w_out, b_out) = params
    batch, in_f = x.shape
    hidden = w_in.shape[1]
    num_classes = w_out.shape[1]

    # Lane-dense padded sizes (exact zero-padding -> same math).
    in_p = _round_up(max(in_f, LANE), LANE)
    hid_p = _round_up(max(hidden, LANE), LANE)
    out_p = _round_up(max(num_classes, LANE), LANE)
    b_p = _round_up(batch, SUBLANE)

    # Pad activations (f32) and weights (pad f32 -> cast to bf16); biases stay f32.
    x_p = _pad_last2(x, b_p, in_p)
    w_in_p = _pad_last2(w_in, in_p, hid_p).astype(jnp.bfloat16)
    w1_p = _pad_last2(w1, hid_p, hid_p).astype(jnp.bfloat16)
    w2_p = _pad_last2(w2, hid_p, hid_p).astype(jnp.bfloat16)
    w_out_p = _pad_last2(w_out, hid_p, out_p).astype(jnp.bfloat16)
    b_in_p = _pad_last2(b_in, 1, hid_p)
    b1_p = _pad_last2(b1, 1, hid_p)
    b2_p = _pad_last2(b2, 1, hid_p)
    b_out_p = _pad_last2(b_out, 1, out_p)

    # Single kernel invocation (no grid): all operands resident in VMEM,
    # no per-step pipelining / weight double-buffering.
    # TODO(synk): for batches >> 256 rows, reintroduce a batch-tiled grid
    # (128/256-row tiles, dimension_semantics=("parallel",)).
    vmem_spec = pl.BlockSpec(memory_space=pltpu.MemorySpace.VMEM)
    kernel = functools.partial(resnet_kernel, num_layers=num_layers)

    out_padded = pl.pallas_call(
        kernel,
        out_shape=jax.ShapeDtypeStruct((b_p, out_p), jnp.float32),
        in_specs=[vmem_spec] * 9,
        out_specs=vmem_spec,
    )(x_p, w_in_p, b_in_p, w1_p, b1_p, w2_p, b2_p, w_out_p, b_out_p)

    return out_padded[:batch, :num_classes]


# --------------------------- parameter init -----------------------------------
def init_params(key, in_features, hidden, num_classes, num_layers):
    """Deterministic PyTorch-Linear-style init: U(-1/sqrt(fan_in), 1/sqrt(fan_in)).

    Weights stored as (in, out) so the forward computes x @ W + b."""
    def linear(k, fan_in, fan_out):
        kw, kb = jax.random.split(k)
        bound = 1.0 / jnp.sqrt(fan_in)
        w = jax.random.uniform(kw, (fan_in, fan_out), jnp.float32, -bound, bound)
        b = jax.random.uniform(kb, (1, fan_out), jnp.float32, -bound, bound)
        return w, b

    keys = jax.random.split(key, 2 + 2 * num_layers)
    w_in, b_in = linear(keys[0], in_features, hidden)
    w_out, b_out = linear(keys[1], hidden, num_classes)

    w1s, b1s, w2s, b2s = [], [], [], []
    for l in range(num_layers):
        w1, b1 = linear(keys[2 + 2 * l], hidden, hidden)
        w2, b2 = linear(keys[3 + 2 * l], hidden, hidden)
        w1s.append(w1); b1s.append(b1); w2s.append(w2); b2s.append(b2)

    w1 = jnp.stack(w1s)          # (L, hidden, hidden)
    b1 = jnp.stack(b1s)          # (L, 1, hidden)
    w2 = jnp.stack(w2s)
    b2 = jnp.stack(b2s)
    return (w_in, b_in, w1, b1, w2, b2, w_out, b_out)


# pure-JAX f32 reference for sanity checking
def resnet_ref(x, params, num_layers=NUM_LAYERS):
    (w_in, b_in, w1, b1, w2, b2, w_out, b_out) = params
    h = jnp.maximum(x @ w_in + b_in, 0.0)
    for l in range(num_layers):
        res = h
        t = jnp.maximum(h @ w1[l] + b1[l], 0.0)
        t = t @ w2[l] + b2[l]
        h = jnp.maximum(t + res, 0.0)
    return h @ w_out + b_out


if __name__ == "__main__":
    key = jax.random.PRNGKey(0)
    k_x, k_p = jax.random.split(key)

    x = jax.random.normal(k_x, (BATCH, IN_FEATURES), dtype=jnp.float32)
    params = init_params(k_p, IN_FEATURES, HIDDEN, NUM_CLASSES, NUM_LAYERS)

    out = resnet_forward(x, params, num_layers=NUM_LAYERS)
    out = jax.block_until_ready(out)

    ref = resnet_ref(x, params)
    assert out.shape == (BATCH, NUM_CLASSES), out.shape
    # bf16 MXU operands (f32 accumulation) -> slightly looser tolerance than pure f32.
    assert jnp.allclose(out, ref, atol=3e-2, rtol=3e-2), "mismatch vs reference"

    print("KERNEL_OK")
</pallas_src>

<mosaic_0001>
module attributes {stable_mosaic.version = 11 : i64} {
  func.func @resnet_kernel(%arg0: memref<16x128xf32, #tpu.memory_space<vmem>>, %arg1: memref<128x128xbf16, #tpu.memory_space<vmem>>, %arg2: memref<1x128xf32, #tpu.memory_space<vmem>>, %arg3: memref<3x128x128xbf16, #tpu.memory_space<vmem>>, %arg4: memref<3x1x128xf32, #tpu.memory_space<vmem>>, %arg5: memref<3x128x128xbf16, #tpu.memory_space<vmem>>, %arg6: memref<3x1x128xf32, #tpu.memory_space<vmem>>, %arg7: memref<128x128xbf16, #tpu.memory_space<vmem>>, %arg8: memref<1x128xf32, #tpu.memory_space<vmem>>, %arg9: memref<16x128xf32, #tpu.memory_space<vmem>>) attributes {dimension_semantics = [], scalar_prefetch = 0 : i64, scratch_operands = 0 : i64, tpu.core_type = #tpu.core_type<tc>} {
    %c0 = arith.constant 0 : index
    %c0_0 = arith.constant 0 : index
    %0 = vector.load %arg0[%c0, %c0_0] : memref<16x128xf32, #tpu.memory_space<vmem>>, vector<16x128xf32>
    %1 = arith.truncf %0 : vector<16x128xf32> to vector<16x128xbf16>
    %c0_1 = arith.constant 0 : index
    %c0_2 = arith.constant 0 : index
    %2 = vector.load %arg1[%c0_1, %c0_2] : memref<128x128xbf16, #tpu.memory_space<vmem>>, vector<128x128xbf16>
    %cst = arith.constant dense<0.000000e+00> : vector<16x128xf32>
    %3 = tpu.matmul %1, %2, %cst {dimension_numbers = #tpu.dot_dimension_numbers<[1], [0], [0], [1], [0, 0, 1, 1], [], []>} : vector<16x128xbf16>, vector<128x128xbf16>, vector<16x128xf32> -> vector<16x128xf32>
    %c0_3 = arith.constant 0 : index
    %c0_4 = arith.constant 0 : index
    %4 = vector.load %arg2[%c0_3, %c0_4] : memref<1x128xf32, #tpu.memory_space<vmem>>, vector<1x128xf32>
    %5 = vector.broadcast %4 : vector<1x128xf32> to vector<16x128xf32>
    %6 = arith.addf %3, %5 : vector<16x128xf32>
    %cst_5 = arith.constant 0.000000e+00 : f32
    %7 = vector.broadcast %cst_5 : f32 to vector<16x128xf32>
    %8 = arith.maximumf %6, %7 : vector<16x128xf32>
    %9 = arith.truncf %8 : vector<16x128xf32> to vector<16x128xbf16>
    %c0_6 = arith.constant 0 : index
    %c0_7 = arith.constant 0 : index
    %c0_8 = arith.constant 0 : index
    %10 = vector.load %arg3[%c0_6, %c0_7, %c0_8] : memref<3x128x128xbf16, #tpu.memory_space<vmem>>, vector<1x128x128xbf16>
    %11 = vector.shape_cast %10 : vector<1x128x128xbf16> to vector<128x128xbf16>
    %cst_9 = arith.constant dense<0.000000e+00> : vector<16x128xf32>
    %12 = tpu.matmul %9, %11, %cst_9 {dimension_numbers = #tpu.dot_dimension_numbers<[1], [0], [0], [1], [0, 0, 1, 1], [], []>} : vector<16x128xbf16>, vector<128x128xbf16>, vector<16x128xf32> -> vector<16x128xf32>
    %c0_10 = arith.constant 0 : index
    %c0_11 = arith.constant 0 : index
    %c0_12 = arith.constant 0 : index
    %13 = vector.load %arg4[%c0_10, %c0_11, %c0_12] : memref<3x1x128xf32, #tpu.memory_space<vmem>>, vector<1x1x128xf32>
    %14 = vector.shape_cast %13 : vector<1x1x128xf32> to vector<1x128xf32>
    %15 = vector.broadcast %14 : vector<1x128xf32> to vector<16x128xf32>
    %16 = arith.addf %12, %15 : vector<16x128xf32>
    %cst_13 = arith.constant 0.000000e+00 : f32
    %17 = vector.broadcast %cst_13 : f32 to vector<16x128xf32>
    %18 = arith.maximumf %16, %17 : vector<16x128xf32>
    %19 = arith.truncf %18 : vector<16x128xf32> to vector<16x128xbf16>
    %c0_14 = arith.constant 0 : index
    %c0_15 = arith.constant 0 : index
    %c0_16 = arith.constant 0 : index
    %20 = vector.load %arg5[%c0_14, %c0_15, %c0_16] : memref<3x128x128xbf16, #tpu.memory_space<vmem>>, vector<1x128x128xbf16>
    %21 = vector.shape_cast %20 : vector<1x128x128xbf16> to vector<128x128xbf16>
    %cst_17 = arith.constant dense<0.000000e+00> : vector<16x128xf32>
    %22 = tpu.matmul %19, %21, %cst_17 {dimension_numbers = #tpu.dot_dimension_numbers<[1], [0], [0], [1], [0, 0, 1, 1], [], []>} : vector<16x128xbf16>, vector<128x128xbf16>, vector<16x128xf32> -> vector<16x128xf32>
    %c0_18 = arith.constant 0 : index
    %c0_19 = arith.constant 0 : index
    %c0_20 = arith.constant 0 : index
    %23 = vector.load %arg6[%c0_18, %c0_19, %c0_20] : memref<3x1x128xf32, #tpu.memory_space<vmem>>, vector<1x1x128xf32>
    %24 = vector.shape_cast %23 : vector<1x1x128xf32> to vector<1x128xf32>
    %25 = vector.broadcast %24 : vector<1x128xf32> to vector<16x128xf32>
    %26 = arith.addf %22, %25 : vector<16x128xf32>
    %27 = arith.addf %26, %8 : vector<16x128xf32>
    %cst_21 = arith.constant 0.000000e+00 : f32
    %28 = vector.broadcast %cst_21 : f32 to vector<16x128xf32>
    %29 = arith.maximumf %27, %28 : vector<16x128xf32>
    %30 = arith.truncf %29 : vector<16x128xf32> to vector<16x128xbf16>
    %c1 = arith.constant 1 : index
    %c0_22 = arith.constant 0 : index
    %c0_23 = arith.constant 0 : index
    %31 = vector.load %arg3[%c1, %c0_22, %c0_23] : memref<3x128x128xbf16, #tpu.memory_space<vmem>>, vector<1x128x128xbf16>
    %32 = vector.shape_cast %31 : vector<1x128x128xbf16> to vector<128x128xbf16>
    %cst_24 = arith.constant dense<0.000000e+00> : vector<16x128xf32>
    %33 = tpu.matmul %30, %32, %cst_24 {dimension_numbers = #tpu.dot_dimension_numbers<[1], [0], [0], [1], [0, 0, 1, 1], [], []>} : vector<16x128xbf16>, vector<128x128xbf16>, vector<16x128xf32> -> vector<16x128xf32>
    %c1_25 = arith.constant 1 : index
    %c0_26 = arith.constant 0 : index
    %c0_27 = arith.constant 0 : index
    %34 = vector.load %arg4[%c1_25, %c0_26, %c0_27] : memref<3x1x128xf32, #tpu.memory_space<vmem>>, vector<1x1x128xf32>
    %35 = vector.shape_cast %34 : vector<1x1x128xf32> to vector<1x128xf32>
    %36 = vector.broadcast %35 : vector<1x128xf32> to vector<16x128xf32>
    %37 = arith.addf %33, %36 : vector<16x128xf32>
    %cst_28 = arith.constant 0.000000e+00 : f32
    %38 = vector.broadcast %cst_28 : f32 to vector<16x128xf32>
    %39 = arith.maximumf %37, %38 : vector<16x128xf32>
    %40 = arith.truncf %39 : vector<16x128xf32> to vector<16x128xbf16>
    %c1_29 = arith.constant 1 : index
    %c0_30 = arith.constant 0 : index
    %c0_31 = arith.constant 0 : index
    %41 = vector.load %arg5[%c1_29, %c0_30, %c0_31] : memref<3x128x128xbf16, #tpu.memory_space<vmem>>, vector<1x128x128xbf16>
    %42 = vector.shape_cast %41 : vector<1x128x128xbf16> to vector<128x128xbf16>
    %cst_32 = arith.constant dense<0.000000e+00> : vector<16x128xf32>
    %43 = tpu.matmul %40, %42, %cst_32 {dimension_numbers = #tpu.dot_dimension_numbers<[1], [0], [0], [1], [0, 0, 1, 1], [], []>} : vector<16x128xbf16>, vector<128x128xbf16>, vector<16x128xf32> -> vector<16x128xf32>
    %c1_33 = arith.constant 1 : index
    %c0_34 = arith.constant 0 : index
    %c0_35 = arith.constant 0 : index
    %44 = vector.load %arg6[%c1_33, %c0_34, %c0_35] : memref<3x1x128xf32, #tpu.memory_space<vmem>>, vector<1x1x128xf32>
    %45 = vector.shape_cast %44 : vector<1x1x128xf32> to vector<1x128xf32>
    %46 = vector.broadcast %45 : vector<1x128xf32> to vector<16x128xf32>
    %47 = arith.addf %43, %46 : vector<16x128xf32>
    %48 = arith.addf %47, %29 : vector<16x128xf32>
    %cst_36 = arith.constant 0.000000e+00 : f32
    %49 = vector.broadcast %cst_36 : f32 to vector<16x128xf32>
    %50 = arith.maximumf %48, %49 : vector<16x128xf32>
    %51 = arith.truncf %50 : vector<16x128xf32> to vector<16x128xbf16>
    %c2 = arith.constant 2 : index
    %c0_37 = arith.constant 0 : index
    %c0_38 = arith.constant 0 : index
    %52 = vector.load %arg3[%c2, %c0_37, %c0_38] : memref<3x128x128xbf16, #tpu.memory_space<vmem>>, vector<1x128x128xbf16>
    %53 = vector.shape_cast %52 : vector<1x128x128xbf16> to vector<128x128xbf16>
    %cst_39 = arith.constant dense<0.000000e+00> : vector<16x128xf32>
    %54 = tpu.matmul %51, %53, %cst_39 {dimension_numbers = #tpu.dot_dimension_numbers<[1], [0], [0], [1], [0, 0, 1, 1], [], []>} : vector<16x128xbf16>, vector<128x128xbf16>, vector<16x128xf32> -> vector<16x128xf32>
    %c2_40 = arith.constant 2 : index
    %c0_41 = arith.constant 0 : index
    %c0_42 = arith.constant 0 : index
    %55 = vector.load %arg4[%c2_40, %c0_41, %c0_42] : memref<3x1x128xf32, #tpu.memory_space<vmem>>, vector<1x1x128xf32>
    %56 = vector.shape_cast %55 : vector<1x1x128xf32> to vector<1x128xf32>
    %57 = vector.broadcast %56 : vector<1x128xf32> to vector<16x128xf32>
    %58 = arith.addf %54, %57 : vector<16x128xf32>
    %cst_43 = arith.constant 0.000000e+00 : f32
    %59 = vector.broadcast %cst_43 : f32 to vector<16x128xf32>
    %60 = arith.maximumf %58, %59 : vector<16x128xf32>
    %61 = arith.truncf %60 : vector<16x128xf32> to vector<16x128xbf16>
    %c2_44 = arith.constant 2 : index
    %c0_45 = arith.constant 0 : index
    %c0_46 = arith.constant 0 : index
    %62 = vector.load %arg5[%c2_44, %c0_45, %c0_46] : memref<3x128x128xbf16, #tpu.memory_space<vmem>>, vector<1x128x128xbf16>
    %63 = vector.shape_cast %62 : vector<1x128x128xbf16> to vector<128x128xbf16>
    %cst_47 = arith.constant dense<0.000000e+00> : vector<16x128xf32>
    %64 = tpu.matmul %61, %63, %cst_47 {dimension_numbers = #tpu.dot_dimension_numbers<[1], [0], [0], [1], [0, 0, 1, 1], [], []>} : vector<16x128xbf16>, vector<128x128xbf16>, vector<16x128xf32> -> vector<16x128xf32>
    %c2_48 = arith.constant 2 : index
    %c0_49 = arith.constant 0 : index
    %c0_50 = arith.constant 0 : index
    %65 = vector.load %arg6[%c2_48, %c0_49, %c0_50] : memref<3x1x128xf32, #tpu.memory_space<vmem>>, vector<1x1x128xf32>
    %66 = vector.shape_cast %65 : vector<1x1x128xf32> to vector<1x128xf32>
    %67 = vector.broadcast %66 : vector<1x128xf32> to vector<16x128xf32>
    %68 = arith.addf %64, %67 : vector<16x128xf32>
    %69 = arith.addf %68, %50 : vector<16x128xf32>
    %cst_51 = arith.constant 0.000000e+00 : f32
    %70 = vector.broadcast %cst_51 : f32 to vector<16x128xf32>
    %71 = arith.maximumf %69, %70 : vector<16x128xf32>
    %72 = arith.truncf %71 : vector<16x128xf32> to vector<16x128xbf16>
    %c0_52 = arith.constant 0 : index
    %c0_53 = arith.constant 0 : index
    %73 = vector.load %arg7[%c0_52, %c0_53] : memref<128x128xbf16, #tpu.memory_space<vmem>>, vector<128x128xbf16>
    %cst_54 = arith.constant dense<0.000000e+00> : vector<16x128xf32>
    %74 = tpu.matmul %72, %73, %cst_54 {dimension_numbers = #tpu.dot_dimension_numbers<[1], [0], [0], [1], [0, 0, 1, 1], [], []>} : vector<16x128xbf16>, vector<128x128xbf16>, vector<16x128xf32> -> vector<16x128xf32>
    %c0_55 = arith.constant 0 : index
    %c0_56 = arith.constant 0 : index
    %75 = vector.load %arg8[%c0_55, %c0_56] : memref<1x128xf32, #tpu.memory_space<vmem>>, vector<1x128xf32>
    %76 = vector.broadcast %75 : vector<1x128xf32> to vector<16x128xf32>
    %77 = arith.addf %74, %76 : vector<16x128xf32>
    %c0_57 = arith.constant 0 : index
    %c0_58 = arith.constant 0 : index
    %78 = vector.load %arg9[%c0_57, %c0_58] : memref<16x128xf32, #tpu.memory_space<vmem>>, vector<16x128xf32>
    tpu.vector_store %arg9[%c0_57, %c0_58], %77 {strides = array<i32>} : memref<16x128xf32, #tpu.memory_space<vmem>>, vector<16x128xf32>,
    return
  }
}

</mosaic_0001>

<llo_original>
// kernel: resnet_forward.1
$region0: #{resnet_forward.1}
  #allocation0 [shape = 'u32[]', space=smem, size = 0x4, offset = 0x4, fixed_abs, tag = 'smem constant byte address 0x4 - core index']
  #allocation1 [shape = 'u32[144,128]{1,0:T(1,128)}', space=vmem, size = 0x12000, scoped, tag = 'internal scratch']
  %s0 = inlined_call_operand.vmem [shape: f32[16,128], index: 0, kind: input, shape index: {}]
  %s1 = inlined_call_operand.vmem [shape: bf16[128,128], index: 1, kind: input, shape index: {}]
  %s2 = inlined_call_operand.vmem [shape: f32[1,128], index: 2, kind: input, shape index: {}]
  %s3 = inlined_call_operand.vmem [shape: bf16[3,128,128], index: 3, kind: input, shape index: {}]
  %s4 = inlined_call_operand.vmem [shape: f32[3,1,128], index: 4, kind: input, shape index: {}]
  %s5 = inlined_call_operand.vmem [shape: bf16[3,128,128], index: 5, kind: input, shape index: {}]
  %s6 = inlined_call_operand.vmem [shape: f32[3,1,128], index: 6, kind: input, shape index: {}]
  %s7 = inlined_call_operand.vmem [shape: bf16[128,128], index: 7, kind: input, shape index: {}]
  %s8 = inlined_call_operand.vmem [shape: f32[1,128], index: 8, kind: input, shape index: {}]
  %s9 = inlined_call_operand.hbm [shape: f32[16,128], index: 9, kind: output, shape index: {}]
  %s10 = sld [smem:[#allocation0]]
  $region46: #{resnet_forward.1} parent=0
    _
  %s12 = ssub.s32 1, %s10
  %s13 = scalar_select 0, %s12, %s10
  $region1: #{resnet_forward.1} parent=0
    #allocation2 [shape = 'u8[8192]{0}', space=vmem, size = 0x2000, scoped, tag = 'output window, operand 0, single buffered']
    #allocation3 [shape = 's32[1]{0}', space=sflag, size = 0x4, scoped, tag = 'scoped memory for resnet_forward.1']
    %14 = vsyncpa [#allocation3], 0
    // Predicated region
    $region2: #{resnet_forward.1} parent=1 // pred_check
      _
    $region3: #{resnet_forward.1} parent=1 // pred_check_branch
      %16 = sbr.rel (0) target = $region5
    $region4: #{resnet_forward.1} parent=1 // pred_region
      _
    $region5: #{resnet_forward.1} parent=1 // pred_fallthru
      _
    // Predicated region
    $region6: #{resnet_forward.1} parent=1 // pred_check
      _
    $region7: #{resnet_forward.1} parent=1 // pred_check_branch
      %18 = sbr.rel (0) target = $region9
    $region8: #{resnet_forward.1} parent=1 // pred_region
      _
    $region9: #{resnet_forward.1} parent=1 // pred_fallthru
      _
    // Predicated region
    $region10: #{resnet_forward.1} parent=1 // pred_check
      _
    $region11: #{resnet_forward.1} parent=1 // pred_check_branch
      %20 = sbr.rel (0) target = $region13
    $region12: #{resnet_forward.1} parent=1 // pred_region
      _
    $region13: #{resnet_forward.1} parent=1 // pred_fallthru
      _
    // Predicated region
    $region14: #{resnet_forward.1} parent=1 // pred_check
      _
    $region15: #{resnet_forward.1} parent=1 // pred_check_branch
      %22 = sbr.rel (0) target = $region17
    $region16: #{resnet_forward.1} parent=1 // pred_region
      _
    $region17: #{resnet_forward.1} parent=1 // pred_fallthru
      _
    // Predicated region
    $region18: #{resnet_forward.1} parent=1 // pred_check
      _
    $region19: #{resnet_forward.1} parent=1 // pred_check_branch
      %24 = sbr.rel (0) target = $region21
    $region20: #{resnet_forward.1} parent=1 // pred_region
      _
    $region21: #{resnet_forward.1} parent=1 // pred_fallthru
      _
    // Predicated region
    $region22: #{resnet_forward.1} parent=1 // pred_check
      _
    $region23: #{resnet_forward.1} parent=1 // pred_check_branch
      %26 = sbr.rel (0) target = $region25
    $region24: #{resnet_forward.1} parent=1 // pred_region
      _
    $region25: #{resnet_forward.1} parent=1 // pred_fallthru
      _
    // Predicated region
    $region26: #{resnet_forward.1} parent=1 // pred_check
      _
    $region27: #{resnet_forward.1} parent=1 // pred_check_branch
      %28 = sbr.rel (0) target = $region29
    $region28: #{resnet_forward.1} parent=1 // pred_region
      _
    $region29: #{resnet_forward.1} parent=1 // pred_fallthru
      _
    // Predicated region
    $region30: #{resnet_forward.1} parent=1 // pred_check
      _
    $region31: #{resnet_forward.1} parent=1 // pred_check_branch
      %30 = sbr.rel (0) target = $region33
    $region32: #{resnet_forward.1} parent=1 // pred_region
      _
    $region33: #{resnet_forward.1} parent=1 // pred_fallthru
      _
    // Predicated region
    $region34: #{resnet_forward.1} parent=1 // pred_check
      _
    $region35: #{resnet_forward.1} parent=1 // pred_check_branch
      %32 = sbr.rel (0) target = $region37
    $region36: #{resnet_forward.1} parent=1 // pred_region
      _
    $region37: #{resnet_forward.1} parent=1 // pred_fallthru
      _
    %v34 = vld [vmem:[%s0] sm:$0xff]
    %v35 = vld [vmem:[%s0 + $0x8] sm:$0xff]
    %v36 = vpack.c.bf16 %v35, %v34
    %v37 = vld [vmem:[%s1] sm:$0xf]
    %v38 = vld [vmem:[%s1 + $0x4] sm:$0xf]
    %v39 = vld [vmem:[%s1 + $0x8] sm:$0xf]
    %v40 = vld [vmem:[%s1 + $0xc] sm:$0xf]
    %v41 = vld [vmem:[%s1 + $0x10] sm:$0xf]
    %v42 = vld [vmem:[%s1 + $0x14] sm:$0xf]
    %v43 = vld [vmem:[%s1 + $0x18] sm:$0xf]
    %v44 = vld [vmem:[%s1 + $0x1c] sm:$0xf]
    %v45 = vld [vmem:[%s1 + $0x20] sm:$0xf]
    %v46 = vld [vmem:[%s1 + $0x24] sm:$0xf]
    %v47 = vld [vmem:[%s1 + $0x28] sm:$0xf]
    %v48 = vld [vmem:[%s1 + $0x2c] sm:$0xf]
    %v49 = vld [vmem:[%s1 + $0x30] sm:$0xf]
    %v50 = vld [vmem:[%s1 + $0x34] sm:$0xf]
    %v51 = vld [vmem:[%s1 + $0x38] sm:$0xf]
    %v52 = vld [vmem:[%s1 + $0x3c] sm:$0xf]
    %v53 = vld [vmem:[%s2] sm:$0x1]
    %v55 = vlaneseq
    %v56 = vshrl.u32 %v55, 7
    %v57 = vsub.s32 0, %v56
    %v58 = vrot.slane %v53, %v57
    %v76 = vunpack.c.l.b16 %v37
    %v77 = vunpack.c.l.b16 %v38
    %v78 = vunpack.c.l.b16 %v39
    %v79 = vunpack.c.l.b16 %v40
    %v80 = vunpack.c.l.b16 %v41
    %v81 = vunpack.c.l.b16 %v42
    %v82 = vunpack.c.l.b16 %v43
    %v83 = vunpack.c.l.b16 %v44
    %v84 = vunpack.c.l.b16 %v45
    %v85 = vunpack.c.l.b16 %v46
    %v86 = vunpack.c.l.b16 %v47
    %v87 = vunpack.c.l.b16 %v48
    %v88 = vunpack.c.l.b16 %v49
    %v89 = vunpack.c.l.b16 %v50
    %v90 = vunpack.c.l.b16 %v51
    %v91 = vunpack.c.l.b16 %v52
    %v92 = vpack.c.b16 %v77, %v76
    %v93 = vpack.c.b16 %v79, %v78
    %v94 = vpack.c.b16 %v81, %v80
    %v95 = vpack.c.b16 %v83, %v82
    %v96 = vpack.c.b16 %v85, %v84
    %v97 = vpack.c.b16 %v87, %v86
    %v98 = vpack.c.b16 %v89, %v88
    %v99 = vpack.c.b16 %v91, %v90
    %108 = vmatprep.subr.bf16.mxu0 0
    %109 = vmatpush1.bf16.msra.mxu0 %v92
    %110 = vmatprep.subr.bf16.mxu0 0
    %111 = vmatpush1.bf16.msra.mxu0 %v93
    %112 = vmatprep.subr.bf16.mxu0 0
    %113 = vmatpush1.bf16.msra.mxu0 %v94
    %114 = vmatprep.subr.bf16.mxu0 0
    %115 = vmatpush1.bf16.msra.mxu0 %v95
    %116 = vmatprep.subr.bf16.mxu0 0
    %117 = vmatpush1.bf16.msra.mxu0 %v96
    %118 = vmatprep.subr.bf16.mxu0 0
    %119 = vmatpush1.bf16.msra.mxu0 %v97
    %120 = vmatprep.subr.bf16.mxu0 0
    %121 = vmatpush1.bf16.msra.mxu0 %v98
    %122 = vmatprep.subr.bf16.mxu0 0
    %123 = vmatpush1.bf16.msra.mxu0 %v99
    %124 = vmatprep.subr.bf16.mxu0 0
    %125 = vmatpush1.bf16.msra.mxu0 0
    %126 = vmatprep.subr.bf16.mxu0 0
    %127 = vmatpush1.bf16.msra.mxu0 0
    %128 = vmatprep.subr.bf16.mxu0 0
    %129 = vmatpush1.bf16.msra.mxu0 0
    %130 = vmatprep.subr.bf16.mxu0 0
    %131 = vmatpush1.bf16.msra.mxu0 0
    %132 = vmatprep.subr.bf16.mxu0 0
    %133 = vmatpush1.bf16.msra.mxu0 0
    %134 = vmatprep.subr.bf16.mxu0 0
    %135 = vmatpush1.bf16.msra.mxu0 0
    %136 = vmatprep.subr.bf16.mxu0 0
    %137 = vmatpush1.bf16.msra.mxu0 0
    %138 = vmatprep.subr.bf16.mxu0 0
    %139 = vmatpush1.bf16.msra.mxu0 0
    %140 = vmatprep.mubr.bf16.mxu0 0
    %141 = vmatmul.mubr.bf16.gmra.mrb[0].mxu0 %v36
    %v142 = vpop.f32.mrb[0].mxu0
    %v143 = vadd.f32 %v58, %v142
    %v144 = vpop.f32.mrb[0].mxu0
    %v145 = vpop.f32.mrb[0].mxu0
    %v146 = vadd.f32 %v58, %v145
    %v147 = vpop.f32.mrb[0].mxu0
    %148 = vdwg.mxu0
    %v149 = vmax.f32 %v143, 0.0
    %v150 = vmax.f32 %v146, 0.0
    %v151 = vpack.c.bf16 %v150, %v149
    %v152 = vld [vmem:[%s3] sm:$0xf]
    %v153 = vld [vmem:[%s3 + $0x4] sm:$0xf]
    %v154 = vld [vmem:[%s3 + $0x8] sm:$0xf]
    %v155 = vld [vmem:[%s3 + $0xc] sm:$0xf]
    %v156 = vld [vmem:[%s3 + $0x10] sm:$0xf]
    %v157 = vld [vmem:[%s3 + $0x14] sm:$0xf]
    %v158 = vld [vmem:[%s3 + $0x18] sm:$0xf]
    %v159 = vld [vmem:[%s3 + $0x1c] sm:$0xf]
    %v160 = vld [vmem:[%s3 + $0x20] sm:$0xf]
    %v161 = vld [vmem:[%s3 + $0x24] sm:$0xf]
    %v162 = vld [vmem:[%s3 + $0x28] sm:$0xf]
    %v163 = vld [vmem:[%s3 + $0x2c] sm:$0xf]
    %v164 = vld [vmem:[%s3 + $0x30] sm:$0xf]
    %v165 = vld [vmem:[%s3 + $0x34] sm:$0xf]
    %v166 = vld [vmem:[%s3 + $0x38] sm:$0xf]
    %v167 = vld [vmem:[%s3 + $0x3c] sm:$0xf]
    %v168 = vld [vmem:[%s4] sm:$0x1]
    %v170 = vlaneseq
    %v171 = vshrl.u32 %v170, 7
    %v172 = vsub.s32 0, %v171
    %v173 = vrot.slane %v168, %v172
    %v191 = vunpack.c.l.b16 %v152
    %v192 = vunpack.c.l.b16 %v153
    %v193 = vunpack.c.l.b16 %v154
    %v194 = vunpack.c.l.b16 %v155
    %v195 = vunpack.c.l.b16 %v156
    %v196 = vunpack.c.l.b16 %v157
    %v197 = vunpack.c.l.b16 %v158
    %v198 = vunpack.c.l.b16 %v159
    %v199 = vunpack.c.l.b16 %v160
    %v200 = vunpack.c.l.b16 %v161
    %v201 = vunpack.c.l.b16 %v162
    %v202 = vunpack.c.l.b16 %v163
    %v203 = vunpack.c.l.b16 %v164
    %v204 = vunpack.c.l.b16 %v165
    %v205 = vunpack.c.l.b16 %v166
    %v206 = vunpack.c.l.b16 %v167
    %v207 = vpack.c.b16 %v192, %v191
    %v208 = vpack.c.b16 %v194, %v193
    %v209 = vpack.c.b16 %v196, %v195
    %v210 = vpack.c.b16 %v198, %v197
    %v211 = vpack.c.b16 %v200, %v199
    %v212 = vpack.c.b16 %v202, %v201
    %v213 = vpack.c.b16 %v204, %v203
    %v214 = vpack.c.b16 %v206, %v205
    %223 = vmatprep.subr.bf16.mxu0 0
    %224 = vmatpush1.bf16.msra.mxu0 %v207
    %225 = vmatprep.subr.bf16.mxu0 0
    %226 = vmatpush1.bf16.msra.mxu0 %v208
    %227 = vmatprep.subr.bf16.mxu0 0
    %228 = vmatpush1.bf16.msra.mxu0 %v209
    %229 = vmatprep.subr.bf16.mxu0 0
    %230 = vmatpush1.bf16.msra.mxu0 %v210
    %231 = vmatprep.subr.bf16.mxu0 0
    %232 = vmatpush1.bf16.msra.mxu0 %v211
    %233 = vmatprep.subr.bf16.mxu0 0
    %234 = vmatpush1.bf16.msra.mxu0 %v212
    %235 = vmatprep.subr.bf16.mxu0 0
    %236 = vmatpush1.bf16.msra.mxu0 %v213
    %237 = vmatprep.subr.bf16.mxu0 0
    %238 = vmatpush1.bf16.msra.mxu0 %v214
    %239 = vmatprep.subr.bf16.mxu0 0
    %240 = vmatpush1.bf16.msra.mxu0 0
    %241 = vmatprep.subr.bf16.mxu0 0
    %242 = vmatpush1.bf16.msra.mxu0 0
    %243 = vmatprep.subr.bf16.mxu0 0
    %244 = vmatpush1.bf16.msra.mxu0 0
    %245 = vmatprep.subr.bf16.mxu0 0
    %246 = vmatpush1.bf16.msra.mxu0 0
    %247 = vmatprep.subr.bf16.mxu0 0
    %248 = vmatpush1.bf16.msra.mxu0 0
    %249 = vmatprep.subr.bf16.mxu0 0
    %250 = vmatpush1.bf16.msra.mxu0 0
    %251 = vmatprep.subr.bf16.mxu0 0
    %252 = vmatpush1.bf16.msra.mxu0 0
    %253 = vmatprep.subr.bf16.mxu0 0
    %254 = vmatpush1.bf16.msra.mxu0 0
    %255 = vmatprep.mubr.bf16.mxu0 0
    %256 = vmatmul.mubr.bf16.gmra.mrb[0].mxu0 %v151
    %v257 = vpop.f32.mrb[0].mxu0
    %v258 = vadd.f32 %v173, %v257
    %v259 = vpop.f32.mrb[0].mxu0
    %v260 = vpop.f32.mrb[0].mxu0
    %v261 = vadd.f32 %v173, %v260
    %v262 = vpop.f32.mrb[0].mxu0
    %263 = vdwg.mxu0
    %v264 = vmax.f32 %v258, 0.0
    %v265 = vmax.f32 %v261, 0.0
    %v266 = vpack.c.bf16 %v265, %v264
    %v267 = vld [vmem:[%s5] sm:$0xf]
    %v268 = vld [vmem:[%s5 + $0x4] sm:$0xf]
    %v269 = vld [vmem:[%s5 + $0x8] sm:$0xf]
    %v270 = vld [vmem:[%s5 + $0xc] sm:$0xf]
    %v271 = vld [vmem:[%s5 + $0x10] sm:$0xf]
    %v272 = vld [vmem:[%s5 + $0x14] sm:$0xf]
    %v273 = vld [vmem:[%s5 + $0x18] sm:$0xf]
    %v274 = vld [vmem:[%s5 + $0x1c] sm:$0xf]
    %v275 = vld [vmem:[%s5 + $0x20] sm:$0xf]
    %v276 = vld [vmem:[%s5 + $0x24] sm:$0xf]
    %v277 = vld [vmem:[%s5 + $0x28] sm:$0xf]
    %v278 = vld [vmem:[%s5 + $0x2c] sm:$0xf]
    %v279 = vld [vmem:[%s5 + $0x30] sm:$0xf]
    %v280 = vld [vmem:[%s5 + $0x34] sm:$0xf]
    %v281 = vld [vmem:[%s5 + $0x38] sm:$0xf]
    %v282 = vld [vmem:[%s5 + $0x3c] sm:$0xf]
    %v283 = vld [vmem:[%s6] sm:$0x1]
    %v285 = vlaneseq
    %v286 = vshrl.u32 %v285, 7
    %v287 = vsub.s32 0, %v286
    %v288 = vrot.slane %v283, %v287
    %v306 = vunpack.c.l.b16 %v267
    %v307 = vunpack.c.l.b16 %v268
    %v308 = vunpack.c.l.b16 %v269
    %v309 = vunpack.c.l.b16 %v270
    %v310 = vunpack.c.l.b16 %v271
    %v311 = vunpack.c.l.b16 %v272
    %v312 = vunpack.c.l.b16 %v273
    %v313 = vunpack.c.l.b16 %v274
    %v314 = vunpack.c.l.b16 %v275
    %v315 = vunpack.c.l.b16 %v276
    %v316 = vunpack.c.l.b16 %v277
    %v317 = vunpack.c.l.b16 %v278
    %v318 = vunpack.c.l.b16 %v279
    %v319 = vunpack.c.l.b16 %v280
    %v320 = vunpack.c.l.b16 %v281
    %v321 = vunpack.c.l.b16 %v282
    %v322 = vpack.c.b16 %v307, %v306
    %v323 = vpack.c.b16 %v309, %v308
    %v324 = vpack.c.b16 %v311, %v310
    %v325 = vpack.c.b16 %v313, %v312
    %v326 = vpack.c.b16 %v315, %v314
    %v327 = vpack.c.b16 %v317, %v316
    %v328 = vpack.c.b16 %v319, %v318
    %v329 = vpack.c.b16 %v321, %v320
    %338 = vmatprep.subr.bf16.mxu0 0
    %339 = vmatpush1.bf16.msra.mxu0 %v322
    %340 = vmatprep.subr.bf16.mxu0 0
    %341 = vmatpush1.bf16.msra.mxu0 %v323
    %342 = vmatprep.subr.bf16.mxu0 0
    %343 = vmatpush1.bf16.msra.mxu0 %v324
    %344 = vmatprep.subr.bf16.mxu0 0
    %345 = vmatpush1.bf16.msra.mxu0 %v325
    %346 = vmatprep.subr.bf16.mxu0 0
    %347 = vmatpush1.bf16.msra.mxu0 %v326
    %348 = vmatprep.subr.bf16.mxu0 0
    %349 = vmatpush1.bf16.msra.mxu0 %v327
    %350 = vmatprep.subr.bf16.mxu0 0
    %351 = vmatpush1.bf16.msra.mxu0 %v328
    %352 = vmatprep.subr.bf16.mxu0 0
    %353 = vmatpush1.bf16.msra.mxu0 %v329
    %354 = vmatprep.subr.bf16.mxu0 0
    %355 = vmatpush1.bf16.msra.mxu0 0
    %356 = vmatprep.subr.bf16.mxu0 0
    %357 = vmatpush1.bf16.msra.mxu0 0
    %358 = vmatprep.subr.bf16.mxu0 0
    %359 = vmatpush1.bf16.msra.mxu0 0
    %360 = vmatprep.subr.bf16.mxu0 0
    %361 = vmatpush1.bf16.msra.mxu0 0
    %362 = vmatprep.subr.bf16.mxu0 0
    %363 = vmatpush1.bf16.msra.mxu0 0
    %364 = vmatprep.subr.bf16.mxu0 0
    %365 = vmatpush1.bf16.msra.mxu0 0
    %366 = vmatprep.subr.bf16.mxu0 0
    %367 = vmatpush1.bf16.msra.mxu0 0
    %368 = vmatprep.subr.bf16.mxu0 0
    %369 = vmatpush1.bf16.msra.mxu0 0
    %370 = vmatprep.mubr.bf16.mxu0 0
    %371 = vmatmul.mubr.bf16.gmra.mrb[0].mxu0 %v266
    %v372 = vpop.f32.mrb[0].mxu0
    %v373 = vadd.f32 %v288, %v372
    %v374 = vpop.f32.mrb[0].mxu0
    %v375 = vpop.f32.mrb[0].mxu0
    %v376 = vadd.f32 %v288, %v375
    %v377 = vpop.f32.mrb[0].mxu0
    %378 = vdwg.mxu0
    %v379 = vadd.f32 %v373, %v149
    %v380 = vadd.f32 %v376, %v150
    %v381 = vmax.f32 %v379, 0.0
    %v382 = vmax.f32 %v380, 0.0
    %v383 = vpack.c.bf16 %v382, %v381
    %s384 = scalar_lea.vmem %s3, 64
    %v385 = vld [vmem:[%s384] sm:$0xf]
    %v386 = vld [vmem:[%s384 + $0x4] sm:$0xf]
    %v387 = vld [vmem:[%s384 + $0x8] sm:$0xf]
    %v388 = vld [vmem:[%s384 + $0xc] sm:$0xf]
    %v389 = vld [vmem:[%s384 + $0x10] sm:$0xf]
    %v390 = vld [vmem:[%s384 + $0x14] sm:$0xf]
    %v391 = vld [vmem:[%s384 + $0x18] sm:$0xf]
    %v392 = vld [vmem:[%s384 + $0x1c] sm:$0xf]
    %v393 = vld [vmem:[%s384 + $0x20] sm:$0xf]
    %v394 = vld [vmem:[%s384 + $0x24] sm:$0xf]
    %v395 = vld [vmem:[%s384 + $0x28] sm:$0xf]
    %v396 = vld [vmem:[%s384 + $0x2c] sm:$0xf]
    %v397 = vld [vmem:[%s384 + $0x30] sm:$0xf]
    %v398 = vld [vmem:[%s384 + $0x34] sm:$0xf]
    %v399 = vld [vmem:[%s384 + $0x38] sm:$0xf]
    %v400 = vld [vmem:[%s384 + $0x3c] sm:$0xf]
    %s401 = scalar_lea.vmem %s4, 1
    %v402 = vld [vmem:[%s401] sm:$0x1]
    %v404 = vlaneseq
    %v405 = vshrl.u32 %v404, 7
    %v406 = vsub.s32 0, %v405
    %v407 = vrot.slane %v402, %v406
    %v425 = vunpack.c.l.b16 %v385
    %v426 = vunpack.c.l.b16 %v386
    %v427 = vunpack.c.l.b16 %v387
    %v428 = vunpack.c.l.b16 %v388
    %v429 = vunpack.c.l.b16 %v389
    %v430 = vunpack.c.l.b16 %v390
    %v431 = vunpack.c.l.b16 %v391
    %v432 = vunpack.c.l.b16 %v392
    %v433 = vunpack.c.l.b16 %v393
    %v434 = vunpack.c.l.b16 %v394
    %v435 = vunpack.c.l.b16 %v395
    %v436 = vunpack.c.l.b16 %v396
    %v437 = vunpack.c.l.b16 %v397
    %v438 = vunpack.c.l.b16 %v398
    %v439 = vunpack.c.l.b16 %v399
    %v440 = vunpack.c.l.b16 %v400
    %v441 = vpack.c.b16 %v426, %v425
    %v442 = vpack.c.b16 %v428, %v427
    %v443 = vpack.c.b16 %v430, %v429
    %v444 = vpack.c.b16 %v432, %v431
    %v445 = vpack.c.b16 %v434, %v433
    %v446 = vpack.c.b16 %v436, %v435
    %v447 = vpack.c.b16 %v438, %v437
    %v448 = vpack.c.b16 %v440, %v439
    %457 = vmatprep.subr.bf16.mxu0 0
    %458 = vmatpush1.bf16.msra.mxu0 %v441
    %459 = vmatprep.subr.bf16.mxu0 0
    %460 = vmatpush1.bf16.msra.mxu0 %v442
    %461 = vmatprep.subr.bf16.mxu0 0
    %462 = vmatpush1.bf16.msra.mxu0 %v443
    %463 = vmatprep.subr.bf16.mxu0 0
    %464 = vmatpush1.bf16.msra.mxu0 %v444
    %465 = vmatprep.subr.bf16.mxu0 0
    %466 = vmatpush1.bf16.msra.mxu0 %v445
    %467 = vmatprep.subr.bf16.mxu0 0
    %468 = vmatpush1.bf16.msra.mxu0 %v446
    %469 = vmatprep.subr.bf16.mxu0 0
    %470 = vmatpush1.bf16.msra.mxu0 %v447
    %471 = vmatprep.subr.bf16.mxu0 0
    %472 = vmatpush1.bf16.msra.mxu0 %v448
    %473 = vmatprep.subr.bf16.mxu0 0
    %474 = vmatpush1.bf16.msra.mxu0 0
    %475 = vmatprep.subr.bf16.mxu0 0
    %476 = vmatpush1.bf16.msra.mxu0 0
    %477 = vmatprep.subr.bf16.mxu0 0
    %478 = vmatpush1.bf16.msra.mxu0 0
    %479 = vmatprep.subr.bf16.mxu0 0
    %480 = vmatpush1.bf16.msra.mxu0 0
    %481 = vmatprep.subr.bf16.mxu0 0
    %482 = vmatpush1.bf16.msra.mxu0 0
    %483 = vmatprep.subr.bf16.mxu0 0
    %484 = vmatpush1.bf16.msra.mxu0 0
    %485 = vmatprep.subr.bf16.mxu0 0
    %486 = vmatpush1.bf16.msra.mxu0 0
    %487 = vmatprep.subr.bf16.mxu0 0
    %488 = vmatpush1.bf16.msra.mxu0 0
    %489 = vmatprep.mubr.bf16.mxu0 0
    %490 = vmatmul.mubr.bf16.gmra.mrb[0].mxu0 %v383
    %v491 = vpop.f32.mrb[0].mxu0
    %v492 = vadd.f32 %v407, %v491
    %v493 = vpop.f32.mrb[0].mxu0
    %v494 = vpop.f32.mrb[0].mxu0
    %v495 = vadd.f32 %v407, %v494
    %v496 = vpop.f32.mrb[0].mxu0
    %497 = vdwg.mxu0
    %v498 = vmax.f32 %v492, 0.0
    %v499 = vmax.f32 %v495, 0.0
    %v500 = vpack.c.bf16 %v499, %v498
    %s501 = scalar_lea.vmem %s5, 64
    %v502 = vld [vmem:[%s501] sm:$0xf]
    %v503 = vld [vmem:[%s501 + $0x4] sm:$0xf]
    %v504 = vld [vmem:[%s501 + $0x8] sm:$0xf]
    %v505 = vld [vmem:[%s501 + $0xc] sm:$0xf]
    %v506 = vld [vmem:[%s501 + $0x10] sm:$0xf]
    %v507 = vld [vmem:[%s501 + $0x14] sm:$0xf]
    %v508 = vld [vmem:[%s501 + $0x18] sm:$0xf]
    %v509 = vld [vmem:[%s501 + $0x1c] sm:$0xf]
    %v510 = vld [vmem:[%s501 + $0x20] sm:$0xf]
    %v511 = vld [vmem:[%s501 + $0x24] sm:$0xf]
    %v512 = vld [vmem:[%s501 + $0x28] sm:$0xf]
    %v513 = vld [vmem:[%s501 + $0x2c] sm:$0xf]
    %v514 = vld [vmem:[%s501 + $0x30] sm:$0xf]
    %v515 = vld [vmem:[%s501 + $0x34] sm:$0xf]
    %v516 = vld [vmem:[%s501 + $0x38] sm:$0xf]
    %v517 = vld [vmem:[%s501 + $0x3c] sm:$0xf]
    %s518 = scalar_lea.vmem %s6, 1
    %v519 = vld [vmem:[%s518] sm:$0x1]
    %v521 = vlaneseq
    %v522 = vshrl.u32 %v521, 7
    %v523 = vsub.s32 0, %v522
    %v524 = vrot.slane %v519, %v523
    %v542 = vunpack.c.l.b16 %v502
    %v543 = vunpack.c.l.b16 %v503
    %v544 = vunpack.c.l.b16 %v504
    %v545 = vunpack.c.l.b16 %v505
    %v546 = vunpack.c.l.b16 %v506
    %v547 = vunpack.c.l.b16 %v507
    %v548 = vunpack.c.l.b16 %v508
    %v549 = vunpack.c.l.b16 %v509
    %v550 = vunpack.c.l.b16 %v510
    %v551 = vunpack.c.l.b16 %v511
    %v552 = vunpack.c.l.b16 %v512
    %v553 = vunpack.c.l.b16 %v513
    %v554 = vunpack.c.l.b16 %v514
    %v555 = vunpack.c.l.b16 %v515
    %v556 = vunpack.c.l.b16 %v516
    %v557 = vunpack.c.l.b16 %v517
    %v558 = vpack.c.b16 %v543, %v542
    %v559 = vpack.c.b16 %v545, %v544
    %v560 = vpack.c.b16 %v547, %v546
    %v561 = vpack.c.b16 %v549, %v548
    %v562 = vpack.c.b16 %v551, %v550
    %v563 = vpack.c.b16 %v553, %v552
    %v564 = vpack.c.b16 %v555, %v554
    %v565 = vpack.c.b16 %v557, %v556
    %574 = vmatprep.subr.bf16.mxu0 0
    %575 = vmatpush1.bf16.msra.mxu0 %v558
    %576 = vmatprep.subr.bf16.mxu0 0
    %577 = vmatpush1.bf16.msra.mxu0 %v559
    %578 = vmatprep.subr.bf16.mxu0 0
    %579 = vmatpush1.bf16.msra.mxu0 %v560
    %580 = vmatprep.subr.bf16.mxu0 0
    %581 = vmatpush1.bf16.msra.mxu0 %v561
    %582 = vmatprep.subr.bf16.mxu0 0
    %583 = vmatpush1.bf16.msra.mxu0 %v562
    %584 = vmatprep.subr.bf16.mxu0 0
    %585 = vmatpush1.bf16.msra.mxu0 %v563
    %586 = vmatprep.subr.bf16.mxu0 0
    %587 = vmatpush1.bf16.msra.mxu0 %v564
    %588 = vmatprep.subr.bf16.mxu0 0
    %589 = vmatpush1.bf16.msra.mxu0 %v565
    %590 = vmatprep.subr.bf16.mxu0 0
    %591 = vmatpush1.bf16.msra.mxu0 0
    %592 = vmatprep.subr.bf16.mxu0 0
    %593 = vmatpush1.bf16.msra.mxu0 0
    %594 = vmatprep.subr.bf16.mxu0 0
    %595 = vmatpush1.bf16.msra.mxu0 0
    %596 = vmatprep.subr.bf16.mxu0 0
    %597 = vmatpush1.bf16.msra.mxu0 0
    %598 = vmatprep.subr.bf16.mxu0 0
    %599 = vmatpush1.bf16.msra.mxu0 0
    %600 = vmatprep.subr.bf16.mxu0 0
    %601 = vmatpush1.bf16.msra.mxu0 0
    %602 = vmatprep.subr.bf16.mxu0 0
    %603 = vmatpush1.bf16.msra.mxu0 0
    %604 = vmatprep.subr.bf16.mxu0 0
    %605 = vmatpush1.bf16.msra.mxu0 0
    %606 = vmatprep.mubr.bf16.mxu0 0
    %607 = vmatmul.mubr.bf16.gmra.mrb[0].mxu0 %v500
    %v608 = vpop.f32.mrb[0].mxu0
    %v609 = vadd.f32 %v524, %v608
    %v610 = vpop.f32.mrb[0].mxu0
    %v611 = vpop.f32.mrb[0].mxu0
    %v612 = vadd.f32 %v524, %v611
    %v613 = vpop.f32.mrb[0].mxu0
    %614 = vdwg.mxu0
    %v615 = vadd.f32 %v609, %v381
    %v616 = vadd.f32 %v612, %v382
    %v617 = vmax.f32 %v615, 0.0
    %v618 = vmax.f32 %v616, 0.0
    %v619 = vpack.c.bf16 %v618, %v617
    %s620 = scalar_lea.vmem %s3, 128
    %v621 = vld [vmem:[%s620] sm:$0xf]
    %v622 = vld [vmem:[%s620 + $0x4] sm:$0xf]
    %v623 = vld [vmem:[%s620 + $0x8] sm:$0xf]
    %v624 = vld [vmem:[%s620 + $0xc] sm:$0xf]
    %v625 = vld [vmem:[%s620 + $0x10] sm:$0xf]
    %v626 = vld [vmem:[%s620 + $0x14] sm:$0xf]
    %v627 = vld [vmem:[%s620 + $0x18] sm:$0xf]
    %v628 = vld [vmem:[%s620 + $0x1c] sm:$0xf]
    %v629 = vld [vmem:[%s620 + $0x20] sm:$0xf]
    %v630 = vld [vmem:[%s620 + $0x24] sm:$0xf]
    %v631 = vld [vmem:[%s620 + $0x28] sm:$0xf]
    %v632 = vld [vmem:[%s620 + $0x2c] sm:$0xf]
    %v633 = vld [vmem:[%s620 + $0x30] sm:$0xf]
    %v634 = vld [vmem:[%s620 + $0x34] sm:$0xf]
    %v635 = vld [vmem:[%s620 + $0x38] sm:$0xf]
    %v636 = vld [vmem:[%s620 + $0x3c] sm:$0xf]
    %s637 = scalar_lea.vmem %s4, 2
    %v638 = vld [vmem:[%s637] sm:$0x1]
    %v640 = vlaneseq
    %v641 = vshrl.u32 %v640, 7
    %v642 = vsub.s32 0, %v641
    %v643 = vrot.slane %v638, %v642
    %v661 = vunpack.c.l.b16 %v621
    %v662 = vunpack.c.l.b16 %v622
    %v663 = vunpack.c.l.b16 %v623
    %v664 = vunpack.c.l.b16 %v624
    %v665 = vunpack.c.l.b16 %v625
    %v666 = vunpack.c.l.b16 %v626
    %v667 = vunpack.c.l.b16 %v627
    %v668 = vunpack.c.l.b16 %v628
    %v669 = vunpack.c.l.b16 %v629
    %v670 = vunpack.c.l.b16 %v630
    %v671 = vunpack.c.l.b16 %v631
    %v672 = vunpack.c.l.b16 %v632
    %v673 = vunpack.c.l.b16 %v633
    %v674 = vunpack.c.l.b16 %v634
    %v675 = vunpack.c.l.b16 %v635
    %v676 = vunpack.c.l.b16 %v636
    %v677 = vpack.c.b16 %v662, %v661
    %v678 = vpack.c.b16 %v664, %v663
    %v679 = vpack.c.b16 %v666, %v665
    %v680 = vpack.c.b16 %v668, %v667
    %v681 = vpack.c.b16 %v670, %v669
    %v682 = vpack.c.b16 %v672, %v671
    %v683 = vpack.c.b16 %v674, %v673
    %v684 = vpack.c.b16 %v676, %v675
    %693 = vmatprep.subr.bf16.mxu0 0
    %694 = vmatpush1.bf16.msra.mxu0 %v677
    %695 = vmatprep.subr.bf16.mxu0 0
    %696 = vmatpush1.bf16.msra.mxu0 %v678
    %697 = vmatprep.subr.bf16.mxu0 0
    %698 = vmatpush1.bf16.msra.mxu0 %v679
    %699 = vmatprep.subr.bf16.mxu0 0
    %700 = vmatpush1.bf16.msra.mxu0 %v680
    %701 = vmatprep.subr.bf16.mxu0 0
    %702 = vmatpush1.bf16.msra.mxu0 %v681
    %703 = vmatprep.subr.bf16.mxu0 0
    %704 = vmatpush1.bf16.msra.mxu0 %v682
    %705 = vmatprep.subr.bf16.mxu0 0
    %706 = vmatpush1.bf16.msra.mxu0 %v683
    %707 = vmatprep.subr.bf16.mxu0 0
    %708 = vmatpush1.bf16.msra.mxu0 %v684
    %709 = vmatprep.subr.bf16.mxu0 0
    %710 = vmatpush1.bf16.msra.mxu0 0
    %711 = vmatprep.subr.bf16.mxu0 0
    %712 = vmatpush1.bf16.msra.mxu0 0
    %713 = vmatprep.subr.bf16.mxu0 0
    %714 = vmatpush1.bf16.msra.mxu0 0
    %715 = vmatprep.subr.bf16.mxu0 0
    %716 = vmatpush1.bf16.msra.mxu0 0
    %717 = vmatprep.subr.bf16.mxu0 0
    %718 = vmatpush1.bf16.msra.mxu0 0
    %719 = vmatprep.subr.bf16.mxu0 0
    %720 = vmatpush1.bf16.msra.mxu0 0
    %721 = vmatprep.subr.bf16.mxu0 0
    %722 = vmatpush1.bf16.msra.mxu0 0
    %723 = vmatprep.subr.bf16.mxu0 0
    %724 = vmatpush1.bf16.msra.mxu0 0
    %725 = vmatprep.mubr.bf16.mxu0 0
    %726 = vmatmul.mubr.bf16.gmra.mrb[0].mxu0 %v619
    %v727 = vpop.f32.mrb[0].mxu0
    %v728 = vadd.f32 %v643, %v727
    %v729 = vpop.f32.mrb[0].mxu0
    %v730 = vpop.f32.mrb[0].mxu0
    %v731 = vadd.f32 %v643, %v730
    %v732 = vpop.f32.mrb[0].mxu0
    %733 = vdwg.mxu0
    %v734 = vmax.f32 %v728, 0.0
    %v735 = vmax.f32 %v731, 0.0
    %v736 = vpack.c.bf16 %v735, %v734
    %s737 = scalar_lea.vmem %s5, 128
    %v738 = vld [vmem:[%s737] sm:$0xf]
    %v739 = vld [vmem:[%s737 + $0x4] sm:$0xf]
    %v740 = vld [vmem:[%s737 + $0x8] sm:$0xf]
    %v741 = vld [vmem:[%s737 + $0xc] sm:$0xf]
    %v742 = vld [vmem:[%s737 + $0x10] sm:$0xf]
    %v743 = vld [vmem:[%s737 + $0x14] sm:$0xf]
    %v744 = vld [vmem:[%s737 + $0x18] sm:$0xf]
    %v745 = vld [vmem:[%s737 + $0x1c] sm:$0xf]
    %v746 = vld [vmem:[%s737 + $0x20] sm:$0xf]
    %v747 = vld [vmem:[%s737 + $0x24] sm:$0xf]
    %v748 = vld [vmem:[%s737 + $0x28] sm:$0xf]
    %v749 = vld [vmem:[%s737 + $0x2c] sm:$0xf]
    %v750 = vld [vmem:[%s737 + $0x30] sm:$0xf]
    %v751 = vld [vmem:[%s737 + $0x34] sm:$0xf]
    %v752 = vld [vmem:[%s737 + $0x38] sm:$0xf]
    %v753 = vld [vmem:[%s737 + $0x3c] sm:$0xf]
    %s754 = scalar_lea.vmem %s6, 2
    %v755 = vld [vmem:[%s754] sm:$0x1]
    %v757 = vlaneseq
    %v758 = vshrl.u32 %v757, 7
    %v759 = vsub.s32 0, %v758
    %v760 = vrot.slane %v755, %v759
    %v778 = vunpack.c.l.b16 %v738
    %v779 = vunpack.c.l.b16 %v739
    %v780 = vunpack.c.l.b16 %v740
    %v781 = vunpack.c.l.b16 %v741
    %v782 = vunpack.c.l.b16 %v742
    %v783 = vunpack.c.l.b16 %v743
    %v784 = vunpack.c.l.b16 %v744
    %v785 = vunpack.c.l.b16 %v745
    %v786 = vunpack.c.l.b16 %v746
    %v787 = vunpack.c.l.b16 %v747
    %v788 = vunpack.c.l.b16 %v748
    %v789 = vunpack.c.l.b16 %v749
    %v790 = vunpack.c.l.b16 %v750
    %v791 = vunpack.c.l.b16 %v751
    %v792 = vunpack.c.l.b16 %v752
    %v793 = vunpack.c.l.b16 %v753
    %v794 = vpack.c.b16 %v779, %v778
    %v795 = vpack.c.b16 %v781, %v780
    %v796 = vpack.c.b16 %v783, %v782
    %v797 = vpack.c.b16 %v785, %v784
    %v798 = vpack.c.b16 %v787, %v786
    %v799 = vpack.c.b16 %v789, %v788
    %v800 = vpack.c.b16 %v791, %v790
    %v801 = vpack.c.b16 %v793, %v792
    %810 = vmatprep.subr.bf16.mxu0 0
    %811 = vmatpush1.bf16.msra.mxu0 %v794
    %812 = vmatprep.subr.bf16.mxu0 0
    %813 = vmatpush1.bf16.msra.mxu0 %v795
    %814 = vmatprep.subr.bf16.mxu0 0
    %815 = vmatpush1.bf16.msra.mxu0 %v796
    %816 = vmatprep.subr.bf16.mxu0 0
    %817 = vmatpush1.bf16.msra.mxu0 %v797
    %818 = vmatprep.subr.bf16.mxu0 0
    %819 = vmatpush1.bf16.msra.mxu0 %v798
    %820 = vmatprep.subr.bf16.mxu0 0
    %821 = vmatpush1.bf16.msra.mxu0 %v799
    %822 = vmatprep.subr.bf16.mxu0 0
    %823 = vmatpush1.bf16.msra.mxu0 %v800
    %824 = vmatprep.subr.bf16.mxu0 0
    %825 = vmatpush1.bf16.msra.mxu0 %v801
    %826 = vmatprep.subr.bf16.mxu0 0
    %827 = vmatpush1.bf16.msra.mxu0 0
    %828 = vmatprep.subr.bf16.mxu0 0
    %829 = vmatpush1.bf16.msra.mxu0 0
    %830 = vmatprep.subr.bf16.mxu0 0
    %831 = vmatpush1.bf16.msra.mxu0 0
    %832 = vmatprep.subr.bf16.mxu0 0
    %833 = vmatpush1.bf16.msra.mxu0 0
    %834 = vmatprep.subr.bf16.mxu0 0
    %835 = vmatpush1.bf16.msra.mxu0 0
    %836 = vmatprep.subr.bf16.mxu0 0
    %837 = vmatpush1.bf16.msra.mxu0 0
    %838 = vmatprep.subr.bf16.mxu0 0
    %839 = vmatpush1.bf16.msra.mxu0 0
    %840 = vmatprep.subr.bf16.mxu0 0
    %841 = vmatpush1.bf16.msra.mxu0 0
    %842 = vmatprep.mubr.bf16.mxu0 0
    %843 = vmatmul.mubr.bf16.gmra.mrb[0].mxu0 %v736
    %v844 = vpop.f32.mrb[0].mxu0
    %v845 = vadd.f32 %v760, %v844
    %v846 = vpop.f32.mrb[0].mxu0
    %v847 = vpop.f32.mrb[0].mxu0
    %v848 = vadd.f32 %v760, %v847
    %v849 = vpop.f32.mrb[0].mxu0
    %850 = vdwg.mxu0
    %v851 = vadd.f32 %v845, %v617
    %v852 = vadd.f32 %v848, %v618
    %v853 = vmax.f32 %v851, 0.0
    %v854 = vmax.f32 %v852, 0.0
    %v855 = vpack.c.bf16 %v854, %v853
    %v856 = vld [vmem:[%s7] sm:$0xf]
    %v857 = vld [vmem:[%s7 + $0x4] sm:$0xf]
    %v858 = vld [vmem:[%s7 + $0x8] sm:$0xf]
    %v859 = vld [vmem:[%s7 + $0xc] sm:$0xf]
    %v860 = vld [vmem:[%s7 + $0x10] sm:$0xf]
    %v861 = vld [vmem:[%s7 + $0x14] sm:$0xf]
    %v862 = vld [vmem:[%s7 + $0x18] sm:$0xf]
    %v863 = vld [vmem:[%s7 + $0x1c] sm:$0xf]
    %v864 = vld [vmem:[%s7 + $0x20] sm:$0xf]
    %v865 = vld [vmem:[%s7 + $0x24] sm:$0xf]
    %v866 = vld [vmem:[%s7 + $0x28] sm:$0xf]
    %v867 = vld [vmem:[%s7 + $0x2c] sm:$0xf]
    %v868 = vld [vmem:[%s7 + $0x30] sm:$0xf]
    %v869 = vld [vmem:[%s7 + $0x34] sm:$0xf]
    %v870 = vld [vmem:[%s7 + $0x38] sm:$0xf]
    %v871 = vld [vmem:[%s7 + $0x3c] sm:$0xf]
    %v872 = vld [vmem:[%s8] sm:$0x1]
    %v874 = vlaneseq
    %v875 = vshrl.u32 %v874, 7
    %v876 = vsub.s32 0, %v875
    %v877 = vrot.slane %v872, %v876
    %v895 = vunpack.c.l.b16 %v856
    %v896 = vunpack.c.l.b16 %v857
    %v897 = vunpack.c.l.b16 %v858
    %v898 = vunpack.c.l.b16 %v859
    %v899 = vunpack.c.l.b16 %v860
    %v900 = vunpack.c.l.b16 %v861
    %v901 = vunpack.c.l.b16 %v862
    %v902 = vunpack.c.l.b16 %v863
    %v903 = vunpack.c.l.b16 %v864
    %v904 = vunpack.c.l.b16 %v865
    %v905 = vunpack.c.l.b16 %v866
    %v906 = vunpack.c.l.b16 %v867
    %v907 = vunpack.c.l.b16 %v868
    %v908 = vunpack.c.l.b16 %v869
    %v909 = vunpack.c.l.b16 %v870
    %v910 = vunpack.c.l.b16 %v871
    %v911 = vpack.c.b16 %v896, %v895
    %v912 = vpack.c.b16 %v898, %v897
    %v913 = vpack.c.b16 %v900, %v899
    %v914 = vpack.c.b16 %v902, %v901
    %v915 = vpack.c.b16 %v904, %v903
    %v916 = vpack.c.b16 %v906, %v905
    %v917 = vpack.c.b16 %v908, %v907
    %v918 = vpack.c.b16 %v910, %v909
    %927 = vmatprep.subr.bf16.mxu0 0
    %928 = vmatpush1.bf16.msra.mxu0 %v911
    %929 = vmatprep.subr.bf16.mxu0 0
    %930 = vmatpush1.bf16.msra.mxu0 %v912
    %931 = vmatprep.subr.bf16.mxu0 0
    %932 = vmatpush1.bf16.msra.mxu0 %v913
    %933 = vmatprep.subr.bf16.mxu0 0
    %934 = vmatpush1.bf16.msra.mxu0 %v914
    %935 = vmatprep.subr.bf16.mxu0 0
    %936 = vmatpush1.bf16.msra.mxu0 %v915
    %937 = vmatprep.subr.bf16.mxu0 0
    %938 = vmatpush1.bf16.msra.mxu0 %v916
    %939 = vmatprep.subr.bf16.mxu0 0
    %940 = vmatpush1.bf16.msra.mxu0 %v917
    %941 = vmatprep.subr.bf16.mxu0 0
    %942 = vmatpush1.bf16.msra.mxu0 %v918
    %943 = vmatprep.subr.bf16.mxu0 0
    %944 = vmatpush1.bf16.msra.mxu0 0
    %945 = vmatprep.subr.bf16.mxu0 0
    %946 = vmatpush1.bf16.msra.mxu0 0
    %947 = vmatprep.subr.bf16.mxu0 0
    %948 = vmatpush1.bf16.msra.mxu0 0
    %949 = vmatprep.subr.bf16.mxu0 0
    %950 = vmatpush1.bf16.msra.mxu0 0
    %951 = vmatprep.subr.bf16.mxu0 0
    %952 = vmatpush1.bf16.msra.mxu0 0
    %953 = vmatprep.subr.bf16.mxu0 0
    %954 = vmatpush1.bf16.msra.mxu0 0
    %955 = vmatprep.subr.bf16.mxu0 0
    %956 = vmatpush1.bf16.msra.mxu0 0
    %957 = vmatprep.subr.bf16.mxu0 0
    %958 = vmatpush1.bf16.msra.mxu0 0
    %959 = vmatprep.mubr.bf16.mxu0 0
    %960 = vmatmul.mubr.bf16.gmra.mrb[0].mxu0 %v855
    %v961 = vpop.f32.mrb[0].mxu0
    %v962 = vadd.f32 %v877, %v961
    %v963 = vpop.f32.mrb[0].mxu0
    %v964 = vpop.f32.mrb[0].mxu0
    %v965 = vadd.f32 %v877, %v964
    %v966 = vpop.f32.mrb[0].mxu0
    %967 = vdwg.mxu0
    %968 = vst [vmem:[#allocation2] sm:$0xff] %v962
    %969 = vst [vmem:[#allocation2 + $0x8] sm:$0xff] %v965
    // Predicated region
    $region38: #{resnet_forward.1} parent=1 // pred_check
      _
    $region39: #{resnet_forward.1} parent=1 // pred_check_branch
      %971 = sbr.rel (0) target = $region41
    $region40: #{resnet_forward.1} parent=1 // pred_region
      %s973 = ssub.s32 256, 256
      %974 = vsyncadd [#allocation3], %s973
      %s975 = sshll.u32 [#allocation2], 4
      %s976 = int_to_ptr.vmem [resolvable:$true] %s975
      %981 = dma.vmem_to_hbm [thread:$0]  %s976, 256, %s9, [#allocation3], 128, 128, 8
    $region41: #{resnet_forward.1} parent=1 // pred_fallthru
      _
    // Predicated region
    $region42: #{resnet_forward.1} parent=1 // pred_check
      _
    $region43: #{resnet_forward.1} parent=1 // pred_check_branch
      %983 = sbr.rel (0) target = $region45
    $region44: #{resnet_forward.1} parent=1 // pred_region
      %984 = dma.done [#allocation3], 256
    $region45: #{resnet_forward.1} parent=1 // pred_fallthru
      _
    %985 = vsyncpa [#allocation3], 1

</llo_original>
